<compile_context>
chip_gen: v5e
topology: v5e:2x2
jax: 0.10.0
libtpu: 0.0.40
codegen_flags: <defaults>
</compile_context>

<pallas_src>
import functools

import jax
import jax.numpy as jnp
from jax.experimental import pallas as pl
from jax.experimental.pallas import tpu as pltpu


def _sepconv_kernel(*refs, fast, K, stride, padding, dilation,
                    H, W, Wp, Hout, Wout, C, Cout, BT,
                    data_start, scratch_cols, chunk):
    """One batch tile (BT images) per grid step.

    refs (fast path)   : x_ref, wdw_ref, wpw_ref, mask_ref, o_ref, xpad_ref, dw_ref
    refs (general path): x_ref, wdw_ref, wpw_ref,           o_ref, xpad_ref, dw_ref

    x_ref   : (BT*C, H*W)            flattened NCHW rows (one row per image-channel)
    wdw_ref : (K*K, BT*C, 1)         depthwise weights, tiled over the batch tile
    wpw_ref : (BT*Cout, BT*C)        block-diagonal pointwise weights
    mask_ref: (K, Hout*Wout)         per-tap-column W-padding lane masks (fast path)
    o_ref   : (BT*Cout, Hout*Wout)   lane-dense output rows
    xpad_ref: (BT*C, scratch_cols)   VMEM scratch holding the padded images
    dw_ref  : (BT*C, Hout*Wout)      VMEM scratch holding the depthwise result
    """
    f32 = jnp.float32
    RT = BT * C
    Lout = Hout * Wout

    if fast:
        x_ref, wdw_ref, wpw_ref, mask_ref, o_ref, xpad_ref, dw_ref = refs
    else:
        x_ref, wdw_ref, wpw_ref, o_ref, xpad_ref, dw_ref = refs

    if fast:
        B = data_start - padding * W          # base lane of padded row 0 (>= padding)

        # -- 1) zero only the border lanes (the interior is fully overwritten
        #       below, every step, so this stays tiny and megacore-safe).
        if data_start > 0:
            xpad_ref[:, 0:data_start] = jnp.zeros((RT, data_start), f32)
        tail = scratch_cols - (data_start + H * W)
        if tail > 0:
            xpad_ref[:, data_start + H * W:scratch_cols] = jnp.zeros((RT, tail), f32)

        # -- 2) ONE contiguous, lane-aligned bulk copy of the whole input block
        #       (H-padding only; W-padding is handled by the tap masks).
        xpad_ref[:, data_start:data_start + H * W] = x_ref[...].astype(f32)

        # -- 3) depthwise conv: K*K contiguous lane-shifted FMAs on the VPU.
        #       Chunked along the lane axis so acc + tap temporaries stay within
        #       a handful of vregs; each chunk is flushed to the dw scratch.
        for c0 in range(0, Lout, chunk):
            cl = min(chunk, Lout - c0)
            acc = jnp.zeros((RT, cl), f32)
            for kh in range(K):
                for kw in range(K):
                    off = B + kh * dilation * W + kw * dilation - padding + c0
                    tap = xpad_ref[:, off:off + cl]
                    if kw * dilation != padding:      # tap can wrap across a row edge
                        tap = tap * mask_ref[kw:kw + 1, c0:c0 + cl]
                    acc = acc + tap * wdw_ref[kh * K + kw].astype(f32)
            dw_ref[:, c0:c0 + cl] = acc
    else:
        # General fallback: W-padded scratch (pitch Wp), per-row copies, row-wise
        # compaction into the lane-dense dw scratch.
        # TODO(synk): border-only zeroing + compute-at-stride-1-then-subsample.
        xpad_ref[...] = jnp.zeros_like(xpad_ref)
        for h in range(H):                            # H is static -> unrolled copies
            dst = (h + padding) * Wp + padding
            xpad_ref[:, dst:dst + W] = x_ref[:, h * W:(h + 1) * W].astype(f32)

        Lr = (Hout - 1) * Wp + Wout
        acc = jnp.zeros((RT, Lr), f32)
        for kh in range(K):
            for kw in range(K):
                off = (kh * Wp + kw) * dilation
                if stride == 1:
                    tap = xpad_ref[:, off:off + Lr]
                else:
                    tap = xpad_ref[:, pl.ds(off, Lr, stride=stride)]
                acc = acc + tap.astype(f32) * wdw_ref[kh * K + kw].astype(f32)

        if Wout == Wp:
            dw_ref[...] = acc
        else:
            for h in range(Hout):
                dw_ref[:, h * Wout:(h + 1) * Wout] = acc[:, h * Wp:h * Wp + Wout]

    # -- 4) pointwise 1x1 conv: a single block-diagonal MXU matmul for the whole
    #       batch tile; output last dim is lane-dense -> one full unmasked store.
    o_ref[...] = jnp.dot(wpw_ref[...].astype(f32), dw_ref[...],
                         preferred_element_type=f32).astype(o_ref.dtype)


def separable_conv2d(x_nchw, w_dw, w_pw, *, stride=1, padding=0, dilation=1):
    """Matches SeparableConv2d.forward (bias=False).

    x_nchw: (N, C, H, W)      float32
    w_dw  : (C, 1, K, K)      depthwise conv weight (groups=C)
    w_pw  : (Cout, C, 1, 1)   pointwise conv weight
    returns (N, Cout, Hout, Wout)
    """
    N, C, H, W = x_nchw.shape
    K = w_dw.shape[2]
    Cout = w_pw.shape[0]
    Hp, Wp = H + 2 * padding, W + 2 * padding
    Hout = (Hp - dilation * (K - 1) - 1) // stride + 1
    Wout = (Wp - dilation * (K - 1) - 1) // stride + 1
    Lout = Hout * Wout

    def _round_up(v, m):
        return ((v + m - 1) // m) * m

    # "Same"-style conv: input pitch == output pitch -> lane-dense fast path.
    fast = (stride == 1) and (2 * padding == dilation * (K - 1))

    if fast:
        data_start = _round_up(padding * (W + 1), 128)   # aligned bulk-copy offset
        B = data_start - padding * W                     # >= padding by construction
        max_off = B + (K - 1) * dilation * (W + 1) - padding
        scratch_cols = _round_up(max(max_off + Lout, data_start + H * W), 128)
    else:
        data_start = 0
        Lr_g = (Hout - 1) * Wp + Wout
        off_max = (K - 1) * dilation * (Wp + 1)
        need = max(Hp * Wp, off_max + (Lr_g - 1) * stride + 1)
        scratch_cols = _round_up(need, 128)

    # Generation-aware VMEM sizing: 128 MiB on v5e/v6e, 64 MiB per core on v7x.
    cap = 64 << 20                                      # conservative default (v7x)
    try:
        cap_attr = getattr(pltpu.get_tpu_info(), "vmem_capacity_bytes", None)
        if cap_attr:
            cap = int(cap_attr)
    except Exception:
        pass
    vmem_limit = min(cap * 3 // 4, 96 << 20)            # <=48 MiB on v7x, <=96 MiB on v5e/v6e
    budget = vmem_limit * 3 // 5                        # per-step working-set budget

    def step_bytes(bt):
        """Per-grid-step VMEM footprint, incl. Pallas double-buffering of tiles."""
        rt = bt * C
        b = 2 * rt * H * W * 4                          # x tile
        b += 2 * K * K * rt * 4                         # depthwise weight tile
        b += 2 * (bt * Cout) * (bt * C) * 4             # block-diag pointwise weights
        b += 2 * (bt * Cout) * Lout * 4                 # output tile
        if fast:
            b += 2 * K * Lout * 4                       # lane-mask tile
        b += rt * scratch_cols * 4                      # padded-image scratch
        b += rt * Lout * 4                              # depthwise-result scratch
        return b

    # BT must keep the BlockSpec row dims legal ((bt*C)%8==0 and (bt*Cout)%8==0,
    # or the full array) and fit the budget; prefer a grid of >=2 steps so both
    # v7x TensorCores get work.
    def _rows_ok(bt):
        return (((bt * C) % 8 == 0 or bt == N)
                and ((bt * Cout) % 8 == 0 or bt == N))

    candidates = [d for d in range(1, N + 1) if N % d == 0 and _rows_ok(d)]
    fitting = [d for d in candidates if step_bytes(d) <= budget]
    multi = [d for d in fitting if N // d >= 2]
    if multi:
        BT = max(multi)
    elif fitting:
        BT = max(fitting)
    else:
        BT = min(candidates)
        vmem_limit = min(cap, max(vmem_limit, step_bytes(BT) + (8 << 20)))
    RT = BT * C

    # Lane-chunk size for the depthwise accumulator (bounds vreg live range).
    chunk = max(128, (8192 // max(RT, 1)) // 128 * 128)

    # Free reshapes only -- no NCHW<->NHWC transposes, no wrapper-side pad.
    x2d = x_nchw.reshape(N * C, H * W)
    wdw_taps = jnp.transpose(w_dw[:, 0, :, :], (1, 2, 0)).reshape(K * K, C)
    wdw_rt = jnp.tile(wdw_taps, (1, BT)).reshape(K * K, RT, 1)   # row r -> chan r%C
    wpw_bd = jnp.kron(jnp.eye(BT, dtype=w_pw.dtype),
                      w_pw[:, :, 0, 0])                          # (BT*Cout, BT*C)

    in_arrays = [x2d, wdw_rt, wpw_bd]
    in_specs = [
        pl.BlockSpec((RT, H * W), lambda n: (n, 0)),
        pl.BlockSpec((K * K, RT, 1), lambda n: (0, 0, 0)),
        pl.BlockSpec((BT * Cout, BT * C), lambda n: (0, 0)),
    ]
    if fast:
        # Per-tap-column W-padding masks (fast path has Wout == W).
        col = jnp.arange(Lout, dtype=jnp.int32) % W
        masks = [(((col + kw * dilation - padding) >= 0)
                  & ((col + kw * dilation - padding) < W)).astype(jnp.float32)
                 for kw in range(K)]
        in_arrays.append(jnp.stack(masks, axis=0))               # (K, Lout)
        in_specs.append(pl.BlockSpec((K, Lout), lambda n: (0, 0)))

    kernel = functools.partial(
        _sepconv_kernel, fast=fast, K=K, stride=stride, padding=padding,
        dilation=dilation, H=H, W=W, Wp=Wp, Hout=Hout, Wout=Wout, C=C, Cout=Cout,
        BT=BT, data_start=data_start, scratch_cols=scratch_cols, chunk=chunk)

    flops = 2 * N * Lout * (C * K * K + C * Cout)
    bytes_accessed = 4 * (x2d.size + wdw_rt.size + wpw_bd.size + N * Cout * Lout)

    out2d = pl.pallas_call(
        kernel,
        out_shape=jax.ShapeDtypeStruct((N * Cout, Lout), x_nchw.dtype),
        grid_spec=pltpu.PrefetchScalarGridSpec(
            num_scalar_prefetch=0,
            grid=(N // BT,),
            in_specs=in_specs,
            out_specs=pl.BlockSpec((BT * Cout, Lout), lambda n: (n, 0)),
            scratch_shapes=[pltpu.VMEM((RT, scratch_cols), jnp.float32),
                            pltpu.VMEM((RT, Lout), jnp.float32)],
        ),
        compiler_params=pltpu.CompilerParams(
            dimension_semantics=("parallel",),
            vmem_limit_bytes=int(vmem_limit)),
        cost_estimate=pl.CostEstimate(
            flops=flops, transcendentals=0, bytes_accessed=bytes_accessed),
    )(*in_arrays)

    return out2d.reshape(N, Cout, Hout, Wout)


def _reference(x, w_dw, w_pw, *, stride, padding, dilation):
    """Pure-JAX reference using lax conv (NCHW, matching PyTorch semantics)."""
    C = x.shape[1]
    y = jax.lax.conv_general_dilated(
        x, w_dw, window_strides=(stride, stride),
        padding=((padding, padding), (padding, padding)),
        rhs_dilation=(dilation, dilation),
        dimension_numbers=("NCHW", "OIHW", "NCHW"),
        feature_group_count=C)
    y = jax.lax.conv_general_dilated(
        y, w_pw, window_strides=(1, 1), padding="VALID",
        dimension_numbers=("NCHW", "OIHW", "NCHW"))
    return y


if __name__ == "__main__":
    # Module config for this synthetic instance.
    in_channels, out_channels = 4, 8
    kernel_size, stride, padding, dilation = 3, 1, 1, 1

    key = jax.random.PRNGKey(0)
    kx, kdw, kpw = jax.random.split(key, 3)

    x = jax.random.normal(kx, (2, in_channels, 16, 16), dtype=jnp.float32)
    # Deterministic weight init (shapes follow nn.Conv2d):
    w_dw = jax.random.normal(
        kdw, (in_channels, 1, kernel_size, kernel_size), dtype=jnp.float32) * 0.1
    w_pw = jax.random.normal(
        kpw, (out_channels, in_channels, 1, 1), dtype=jnp.float32) * 0.1

    out = separable_conv2d(x, w_dw, w_pw,
                           stride=stride, padding=padding, dilation=dilation)
    out = jax.block_until_ready(out)

    ref = _reference(x, w_dw, w_pw,
                     stride=stride, padding=padding, dilation=dilation)
    assert out.shape == ref.shape, (out.shape, ref.shape)
    assert jnp.allclose(out, ref, atol=1e-4, rtol=1e-4), float(
        jnp.max(jnp.abs(out - ref)))

    print("KERNEL_OK")
</pallas_src>

<mosaic_0001>
module attributes {stable_mosaic.version = 11 : i64} {
  func.func @_sepconv_kernel(%arg0: i32, %arg1: memref<8x256xf32, #tpu.memory_space<vmem>>, %arg2: memref<9x8x1xf32, #tpu.memory_space<vmem>>, %arg3: memref<16x8xf32, #tpu.memory_space<vmem>>, %arg4: memref<3x256xf32, #tpu.memory_space<vmem>>, %arg5: memref<16x256xf32, #tpu.memory_space<vmem>>, %arg6: memref<8x512xf32, #tpu.memory_space<vmem>>, %arg7: memref<8x256xf32, #tpu.memory_space<vmem>>) attributes {dimension_semantics = [#tpu.dimension_semantics<parallel>], iteration_bounds = array<i64: 1>, scalar_prefetch = 0 : i64, scratch_operands = 2 : i64, tpu.core_type = #tpu.core_type<tc>, window_params = [{transform_indices = @transform_0, window_bounds = array<i64: 8, 256>}, {pipeline_mode = #tpu.pipeline_mode<synchronous>, transform_indices = @transform_1, window_bounds = array<i64: 9, 8, 1>}, {pipeline_mode = #tpu.pipeline_mode<synchronous>, transform_indices = @transform_2, window_bounds = array<i64: 16, 8>}, {pipeline_mode = #tpu.pipeline_mode<synchronous>, transform_indices = @transform_3, window_bounds = array<i64: 3, 256>}, {transform_indices = @transform_4, window_bounds = array<i64: 16, 256>}]} {
    %cst = arith.constant 0.000000e+00 : f32
    %0 = vector.broadcast %cst : f32 to vector<8x128xf32>
    %c0 = arith.constant 0 : index
    %c0_0 = arith.constant 0 : index
    %1 = vector.load %arg6[%c0, %c0_0] : memref<8x512xf32, #tpu.memory_space<vmem>>, vector<8x128xf32>
    tpu.vector_store %arg6[%c0, %c0_0], %0 {strides = array<i32>} : memref<8x512xf32, #tpu.memory_space<vmem>>, vector<8x128xf32>,
    %cst_1 = arith.constant 0.000000e+00 : f32
    %2 = vector.broadcast %cst_1 : f32 to vector<8x128xf32>
    %c0_2 = arith.constant 0 : index
    %c384 = arith.constant 384 : index
    %3 = vector.load %arg6[%c0_2, %c384] : memref<8x512xf32, #tpu.memory_space<vmem>>, vector<8x128xf32>
    tpu.vector_store %arg6[%c0_2, %c384], %2 {strides = array<i32>} : memref<8x512xf32, #tpu.memory_space<vmem>>, vector<8x128xf32>,
    %c0_3 = arith.constant 0 : index
    %c0_4 = arith.constant 0 : index
    %4 = vector.load %arg1[%c0_3, %c0_4] : memref<8x256xf32, #tpu.memory_space<vmem>>, vector<8x256xf32>
    %c0_5 = arith.constant 0 : index
    %c128 = arith.constant 128 : index
    %5 = vector.load %arg6[%c0_5, %c128] : memref<8x512xf32, #tpu.memory_space<vmem>>, vector<8x256xf32>
    tpu.vector_store %arg6[%c0_5, %c128], %4 {strides = array<i32>} : memref<8x512xf32, #tpu.memory_space<vmem>>, vector<8x256xf32>,
    %cst_6 = arith.constant 0.000000e+00 : f32
    %6 = vector.broadcast %cst_6 : f32 to vector<8x256xf32>
    %c0_7 = arith.constant 0 : index
    %c111 = arith.constant 111 : index
    %7 = vector.load %arg6[%c0_7, %c111] : memref<8x512xf32, #tpu.memory_space<vmem>>, vector<8x256xf32>
    %c0_8 = arith.constant 0 : index
    %c0_9 = arith.constant 0 : index
    %8 = vector.load %arg4[%c0_8, %c0_9] : memref<3x256xf32, #tpu.memory_space<vmem>>, vector<1x256xf32>
    %9 = vector.broadcast %8 : vector<1x256xf32> to vector<8x256xf32>
    %10 = arith.mulf %7, %9 : vector<8x256xf32>
    %c0_10 = arith.constant 0 : index
    %c0_11 = arith.constant 0 : index
    %c0_12 = arith.constant 0 : index
    %11 = vector.load %arg2[%c0_10, %c0_11, %c0_12] : memref<9x8x1xf32, #tpu.memory_space<vmem>>, vector<1x8x1xf32>
    %12 = vector.shape_cast %11 : vector<1x8x1xf32> to vector<8x1xf32>
    %13 = vector.broadcast %12 : vector<8x1xf32> to vector<8x256xf32>
    %14 = arith.mulf %10, %13 : vector<8x256xf32>
    %15 = arith.addf %6, %14 : vector<8x256xf32>
    %c0_13 = arith.constant 0 : index
    %c112 = arith.constant 112 : index
    %16 = vector.load %arg6[%c0_13, %c112] : memref<8x512xf32, #tpu.memory_space<vmem>>, vector<8x256xf32>
    %c1 = arith.constant 1 : index
    %c0_14 = arith.constant 0 : index
    %c0_15 = arith.constant 0 : index
    %17 = vector.load %arg2[%c1, %c0_14, %c0_15] : memref<9x8x1xf32, #tpu.memory_space<vmem>>, vector<1x8x1xf32>
    %18 = vector.shape_cast %17 : vector<1x8x1xf32> to vector<8x1xf32>
    %19 = vector.broadcast %18 : vector<8x1xf32> to vector<8x256xf32>
    %20 = arith.mulf %16, %19 : vector<8x256xf32>
    %21 = arith.addf %15, %20 : vector<8x256xf32>
    %c0_16 = arith.constant 0 : index
    %c113 = arith.constant 113 : index
    %22 = vector.load %arg6[%c0_16, %c113] : memref<8x512xf32, #tpu.memory_space<vmem>>, vector<8x256xf32>
    %c2 = arith.constant 2 : index
    %c0_17 = arith.constant 0 : index
    %23 = vector.load %arg4[%c2, %c0_17] : memref<3x256xf32, #tpu.memory_space<vmem>>, vector<1x256xf32>
    %24 = vector.broadcast %23 : vector<1x256xf32> to vector<8x256xf32>
    %25 = arith.mulf %22, %24 : vector<8x256xf32>
    %c2_18 = arith.constant 2 : index
    %c0_19 = arith.constant 0 : index
    %c0_20 = arith.constant 0 : index
    %26 = vector.load %arg2[%c2_18, %c0_19, %c0_20] : memref<9x8x1xf32, #tpu.memory_space<vmem>>, vector<1x8x1xf32>
    %27 = vector.shape_cast %26 : vector<1x8x1xf32> to vector<8x1xf32>
    %28 = vector.broadcast %27 : vector<8x1xf32> to vector<8x256xf32>
    %29 = arith.mulf %25, %28 : vector<8x256xf32>
    %30 = arith.addf %21, %29 : vector<8x256xf32>
    %c0_21 = arith.constant 0 : index
    %c127 = arith.constant 127 : index
    %31 = vector.load %arg6[%c0_21, %c127] : memref<8x512xf32, #tpu.memory_space<vmem>>, vector<8x256xf32>
    %c0_22 = arith.constant 0 : index
    %c0_23 = arith.constant 0 : index
    %32 = vector.load %arg4[%c0_22, %c0_23] : memref<3x256xf32, #tpu.memory_space<vmem>>, vector<1x256xf32>
    %33 = vector.broadcast %32 : vector<1x256xf32> to vector<8x256xf32>
    %34 = arith.mulf %31, %33 : vector<8x256xf32>
    %c3 = arith.constant 3 : index
    %c0_24 = arith.constant 0 : index
    %c0_25 = arith.constant 0 : index
    %35 = vector.load %arg2[%c3, %c0_24, %c0_25] : memref<9x8x1xf32, #tpu.memory_space<vmem>>, vector<1x8x1xf32>
    %36 = vector.shape_cast %35 : vector<1x8x1xf32> to vector<8x1xf32>
    %37 = vector.broadcast %36 : vector<8x1xf32> to vector<8x256xf32>
    %38 = arith.mulf %34, %37 : vector<8x256xf32>
    %39 = arith.addf %30, %38 : vector<8x256xf32>
    %c0_26 = arith.constant 0 : index
    %c128_27 = arith.constant 128 : index
    %40 = vector.load %arg6[%c0_26, %c128_27] : memref<8x512xf32, #tpu.memory_space<vmem>>, vector<8x256xf32>
    %c4 = arith.constant 4 : index
    %c0_28 = arith.constant 0 : index
    %c0_29 = arith.constant 0 : index
    %41 = vector.load %arg2[%c4, %c0_28, %c0_29] : memref<9x8x1xf32, #tpu.memory_space<vmem>>, vector<1x8x1xf32>
    %42 = vector.shape_cast %41 : vector<1x8x1xf32> to vector<8x1xf32>
    %43 = vector.broadcast %42 : vector<8x1xf32> to vector<8x256xf32>
    %44 = arith.mulf %40, %43 : vector<8x256xf32>
    %45 = arith.addf %39, %44 : vector<8x256xf32>
    %c0_30 = arith.constant 0 : index
    %c129 = arith.constant 129 : index
    %46 = vector.load %arg6[%c0_30, %c129] : memref<8x512xf32, #tpu.memory_space<vmem>>, vector<8x256xf32>
    %c2_31 = arith.constant 2 : index
    %c0_32 = arith.constant 0 : index
    %47 = vector.load %arg4[%c2_31, %c0_32] : memref<3x256xf32, #tpu.memory_space<vmem>>, vector<1x256xf32>
    %48 = vector.broadcast %47 : vector<1x256xf32> to vector<8x256xf32>
    %49 = arith.mulf %46, %48 : vector<8x256xf32>
    %c5 = arith.constant 5 : index
    %c0_33 = arith.constant 0 : index
    %c0_34 = arith.constant 0 : index
    %50 = vector.load %arg2[%c5, %c0_33, %c0_34] : memref<9x8x1xf32, #tpu.memory_space<vmem>>, vector<1x8x1xf32>
    %51 = vector.shape_cast %50 : vector<1x8x1xf32> to vector<8x1xf32>
    %52 = vector.broadcast %51 : vector<8x1xf32> to vector<8x256xf32>
    %53 = arith.mulf %49, %52 : vector<8x256xf32>
    %54 = arith.addf %45, %53 : vector<8x256xf32>
    %c0_35 = arith.constant 0 : index
    %c143 = arith.constant 143 : index
    %55 = vector.load %arg6[%c0_35, %c143] : memref<8x512xf32, #tpu.memory_space<vmem>>, vector<8x256xf32>
    %c0_36 = arith.constant 0 : index
    %c0_37 = arith.constant 0 : index
    %56 = vector.load %arg4[%c0_36, %c0_37] : memref<3x256xf32, #tpu.memory_space<vmem>>, vector<1x256xf32>
    %57 = vector.broadcast %56 : vector<1x256xf32> to vector<8x256xf32>
    %58 = arith.mulf %55, %57 : vector<8x256xf32>
    %c6 = arith.constant 6 : index
    %c0_38 = arith.constant 0 : index
    %c0_39 = arith.constant 0 : index
    %59 = vector.load %arg2[%c6, %c0_38, %c0_39] : memref<9x8x1xf32, #tpu.memory_space<vmem>>, vector<1x8x1xf32>
    %60 = vector.shape_cast %59 : vector<1x8x1xf32> to vector<8x1xf32>
    %61 = vector.broadcast %60 : vector<8x1xf32> to vector<8x256xf32>
    %62 = arith.mulf %58, %61 : vector<8x256xf32>
    %63 = arith.addf %54, %62 : vector<8x256xf32>
    %c0_40 = arith.constant 0 : index
    %c144 = arith.constant 144 : index
    %64 = vector.load %arg6[%c0_40, %c144] : memref<8x512xf32, #tpu.memory_space<vmem>>, vector<8x256xf32>
    %c7 = arith.constant 7 : index
    %c0_41 = arith.constant 0 : index
    %c0_42 = arith.constant 0 : index
    %65 = vector.load %arg2[%c7, %c0_41, %c0_42] : memref<9x8x1xf32, #tpu.memory_space<vmem>>, vector<1x8x1xf32>
    %66 = vector.shape_cast %65 : vector<1x8x1xf32> to vector<8x1xf32>
    %67 = vector.broadcast %66 : vector<8x1xf32> to vector<8x256xf32>
    %68 = arith.mulf %64, %67 : vector<8x256xf32>
    %69 = arith.addf %63, %68 : vector<8x256xf32>
    %c0_43 = arith.constant 0 : index
    %c145 = arith.constant 145 : index
    %70 = vector.load %arg6[%c0_43, %c145] : memref<8x512xf32, #tpu.memory_space<vmem>>, vector<8x256xf32>
    %c2_44 = arith.constant 2 : index
    %c0_45 = arith.constant 0 : index
    %71 = vector.load %arg4[%c2_44, %c0_45] : memref<3x256xf32, #tpu.memory_space<vmem>>, vector<1x256xf32>
    %72 = vector.broadcast %71 : vector<1x256xf32> to vector<8x256xf32>
    %73 = arith.mulf %70, %72 : vector<8x256xf32>
    %c8 = arith.constant 8 : index
    %c0_46 = arith.constant 0 : index
    %c0_47 = arith.constant 0 : index
    %74 = vector.load %arg2[%c8, %c0_46, %c0_47] : memref<9x8x1xf32, #tpu.memory_space<vmem>>, vector<1x8x1xf32>
    %75 = vector.shape_cast %74 : vector<1x8x1xf32> to vector<8x1xf32>
    %76 = vector.broadcast %75 : vector<8x1xf32> to vector<8x256xf32>
    %77 = arith.mulf %73, %76 : vector<8x256xf32>
    %78 = arith.addf %69, %77 : vector<8x256xf32>
    %c0_48 = arith.constant 0 : index
    %c0_49 = arith.constant 0 : index
    %79 = vector.load %arg7[%c0_48, %c0_49] : memref<8x256xf32, #tpu.memory_space<vmem>>, vector<8x256xf32>
    tpu.vector_store %arg7[%c0_48, %c0_49], %78 {strides = array<i32>} : memref<8x256xf32, #tpu.memory_space<vmem>>, vector<8x256xf32>,
    %c0_50 = arith.constant 0 : index
    %c0_51 = arith.constant 0 : index
    %80 = vector.load %arg3[%c0_50, %c0_51] : memref<16x8xf32, #tpu.memory_space<vmem>>, vector<16x8xf32>
    %c0_52 = arith.constant 0 : index
    %c0_53 = arith.constant 0 : index
    %81 = vector.load %arg7[%c0_52, %c0_53] : memref<8x256xf32, #tpu.memory_space<vmem>>, vector<8x256xf32>
    %cst_54 = arith.constant dense<0.000000e+00> : vector<16x256xf32>
    %82 = tpu.matmul %80, %81, %cst_54 {dimension_numbers = #tpu.dot_dimension_numbers<[1], [0], [0], [1], [0, 0, 1, 1], [], []>} : vector<16x8xf32>, vector<8x256xf32>, vector<16x256xf32> -> vector<16x256xf32>
    %c0_55 = arith.constant 0 : index
    %c0_56 = arith.constant 0 : index
    %83 = vector.load %arg5[%c0_55, %c0_56] : memref<16x256xf32, #tpu.memory_space<vmem>>, vector<16x256xf32>
    tpu.vector_store %arg5[%c0_55, %c0_56], %82 {strides = array<i32>} : memref<16x256xf32, #tpu.memory_space<vmem>>, vector<16x256xf32>,
    return
  }
  func.func @transform_0(%arg0: i32) -> (i32, i32) {
    %c0_i32 = arith.constant 0 : i32
    %c0_i32_0 = arith.constant 0 : i32
    return %arg0, %c0_i32 : i32, i32
  }
  func.func @transform_1(%arg0: i32) -> (i32, i32, i32) {
    %c0_i32 = arith.constant 0 : i32
    %c0_i32_0 = arith.constant 0 : i32
    %c0_i32_1 = arith.constant 0 : i32
    %c0_i32_2 = arith.constant 0 : i32
    return %c0_i32, %c0_i32_0, %c0_i32_1 : i32, i32, i32
  }
  func.func @transform_2(%arg0: i32) -> (i32, i32) {
    %c0_i32 = arith.constant 0 : i32
    %c0_i32_0 = arith.constant 0 : i32
    %c0_i32_1 = arith.constant 0 : i32
    return %c0_i32, %c0_i32_0 : i32, i32
  }
  func.func @transform_3(%arg0: i32) -> (i32, i32) {
    %c0_i32 = arith.constant 0 : i32
    %c0_i32_0 = arith.constant 0 : i32
    %c0_i32_1 = arith.constant 0 : i32
    return %c0_i32, %c0_i32_0 : i32, i32
  }
  func.func @transform_4(%arg0: i32) -> (i32, i32) {
    %c0_i32 = arith.constant 0 : i32
    %c0_i32_0 = arith.constant 0 : i32
    return %arg0, %c0_i32 : i32, i32
  }
}

</mosaic_0001>

<llo_original>
// kernel: tpu_custom_call.1
$region0: #{tpu_custom_call.1}
  #allocation0 [shape = 'u32[]', space=smem, size = 0x4, offset = 0x4, fixed_abs, tag = 'smem constant byte address 0x4 - core index']
  #allocation1 [shape = 'u32[72,128]{1,0:T(1,128)}', space=vmem, size = 0x9000, scoped, tag = 'internal scratch']
  #allocation2 [shape = 'f32[8,512]{1,0:T(8,128)}', space=vmem, size = 0x4000, scoped, tag = 'scratch operand']
  #allocation3 [shape = 'f32[8,256]{1,0:T(8,128)}', space=vmem, size = 0x2000, scoped, tag = 'scratch operand']
  %s0 = inlined_call_operand.vmem [shape: f32[8,256], index: 0, kind: input, shape index: {}]
  %s1 = inlined_call_operand.vmem [shape: f32[9,8,1], index: 1, kind: input, shape index: {}]
  %s2 = inlined_call_operand.vmem [shape: f32[16,8], index: 2, kind: input, shape index: {}]
  %s3 = inlined_call_operand.vmem [shape: f32[3,256], index: 3, kind: input, shape index: {}]
  %s4 = inlined_call_operand.hbm [shape: f32[16,256], index: 4, kind: output, shape index: {}]
  %s5 = sld [smem:[#allocation0]]
  $region26: #{tpu_custom_call.1} parent=0
    _
  %s7 = ssub.s32 1, %s5
  %s8 = scalar_select 0, %s7, %s5
  $region1: #{tpu_custom_call.1} parent=0
    #allocation4 [shape = 'u8[16384]{0}', space=vmem, size = 0x4000, scoped, tag = 'output window, operand 0, single buffered']
    #allocation5 [shape = 's32[1]{0}', space=sflag, size = 0x4, scoped, tag = 'scoped memory for tpu_custom_call.1']
    %9 = vsyncpa [#allocation5], 0
    // Predicated region
    $region2: #{tpu_custom_call.1} parent=1 // pred_check
      _
    $region3: #{tpu_custom_call.1} parent=1 // pred_check_branch
      %11 = sbr.rel (0) target = $region5
    $region4: #{tpu_custom_call.1} parent=1 // pred_region
      _
    $region5: #{tpu_custom_call.1} parent=1 // pred_fallthru
      _
    // Predicated region
    $region6: #{tpu_custom_call.1} parent=1 // pred_check
      _
    $region7: #{tpu_custom_call.1} parent=1 // pred_check_branch
      %13 = sbr.rel (0) target = $region9
    $region8: #{tpu_custom_call.1} parent=1 // pred_region
      _
    $region9: #{tpu_custom_call.1} parent=1 // pred_fallthru
      _
    // Predicated region
    $region10: #{tpu_custom_call.1} parent=1 // pred_check
      _
    $region11: #{tpu_custom_call.1} parent=1 // pred_check_branch
      %15 = sbr.rel (0) target = $region13
    $region12: #{tpu_custom_call.1} parent=1 // pred_region
      _
    $region13: #{tpu_custom_call.1} parent=1 // pred_fallthru
      _
    // Predicated region
    $region14: #{tpu_custom_call.1} parent=1 // pred_check
      _
    $region15: #{tpu_custom_call.1} parent=1 // pred_check_branch
      %17 = sbr.rel (0) target = $region17
    $region16: #{tpu_custom_call.1} parent=1 // pred_region
      _
    $region17: #{tpu_custom_call.1} parent=1 // pred_fallthru
      _
    %18 = vst [vmem:[#allocation2] sm:$0xff] 0.0
    %19 = vst [vmem:[#allocation2 + $0x18] sm:$0xff] 0.0
    %v20 = vld [vmem:[%s0] sm:$0xff]
    %v21 = vld [vmem:[%s0 + $0x8] sm:$0xff]
    %22 = vst [vmem:[#allocation2 + $0x8] sm:$0xff] %v20
    %23 = vst [vmem:[#allocation2 + $0x10] sm:$0xff] %v21
    %v24 = vld [vmem:[#allocation2] sm:$0xff]
    %v25 = vld [vmem:[#allocation2 + $0x8] sm:$0xff]
    %v26 = vld [vmem:[#allocation2 + $0x10] sm:$0xff]
    %v27 = vld [vmem:[%s3] ss:$4 sm:$0x3]
    %v29 = vperm.slane %v27, 0
    %v30 = vperm.slane %v27, 1
    %31 = vrot.lane.b32.xlu0 %v29, 111
    %v32 = vpop.permute.xlu0 %31
    %33 = vrot.lane.b32.xlu0 %v30, 111
    %v34 = vpop.permute.xlu0 %33
    %vm35 = vcmask 908288
    %v36 = vsel %vm35, %v32, %v34
    %v40 = vmul.f32 %v24, %v32
    %v41 = vmul.f32 %v25, %v36
    %v42 = vmul.f32 %v26, %v34
    %v43 = vld [vmem:[%s1] sm:$0xff]
    %45 = vset.pattern.permute.xlu0 0
    %46 = vperm.xlu0 %45, %v43
    %v47 = vpop.permute.xlu0 %46
    %v49 = vmul.f32 %v40, %v47
    %v50 = vmul.f32 %v41, %v47
    %v51 = vmul.f32 %v42, %v47
    %v52 = vadd.f32 %v49, 0.0
    %v53 = vadd.f32 %v50, 0.0
    %v54 = vadd.f32 %v51, 0.0
    %s55 = scalar_lea.vmem %s1, 8
    %v56 = vld [vmem:[%s55] sm:$0xff]
    %58 = vset.pattern.permute.xlu0 0
    %59 = vperm.xlu0 %58, %v56
    %v60 = vpop.permute.xlu0 %59
    %v62 = vmul.f32 %v24, %v60
    %v63 = vmul.f32 %v25, %v60
    %v64 = vmul.f32 %v26, %v60
    %68 = vrot.lane.b32.xlu0 %v62, 127
    %v69 = vpop.permute.xlu0 %68
    %70 = vrot.lane.b32.xlu0 %v63, 127
    %v71 = vpop.permute.xlu0 %70
    %72 = vrot.lane.b32.xlu0 %v64, 127
    %v73 = vpop.permute.xlu0 %72
    %vm74 = vcmask 1039360
    %v75 = vsel %vm74, %v69, %v71
    %v76 = vsel %vm74, %v71, %v73
    %v80 = vadd.f32 %v52, %v75
    %v81 = vadd.f32 %v53, %v76
    %v82 = vadd.f32 %v54, %v73
    %s83 = scalar_lea.vmem %s3, 2
    %v84 = vld [vmem:[%s83] ss:$4 sm:$0x3]
    %v86 = vperm.slane %v84, 0
    %v87 = vperm.slane %v84, 1
    %88 = vrot.lane.b32.xlu0 %v86, 113
    %v89 = vpop.permute.xlu0 %88
    %90 = vrot.lane.b32.xlu0 %v87, 113
    %v91 = vpop.permute.xlu0 %90
    %vm92 = vcmask 924672
    %v93 = vsel %vm92, %v89, %v91
    %v97 = vmul.f32 %v24, %v89
    %v98 = vmul.f32 %v25, %v93
    %v99 = vmul.f32 %v26, %v91
    %s100 = scalar_lea.vmem %s1, 16
    %v101 = vld [vmem:[%s100] sm:$0xff]
    %103 = vset.pattern.permute.xlu0 0
    %104 = vperm.xlu0 %103, %v101
    %v105 = vpop.permute.xlu0 %104
    %v107 = vmul.f32 %v97, %v105
    %v108 = vmul.f32 %v98, %v105
    %v109 = vmul.f32 %v99, %v105
    %113 = vrot.lane.b32.xlu0 %v107, 126
    %v114 = vpop.permute.xlu0 %113
    %115 = vrot.lane.b32.xlu0 %v108, 126
    %v116 = vpop.permute.xlu0 %115
    %117 = vrot.lane.b32.xlu0 %v109, 126
    %v118 = vpop.permute.xlu0 %117
    %vm119 = vcmask 1031168
    %v120 = vsel %vm119, %v114, %v116
    %v121 = vsel %vm119, %v116, %v118
    %v125 = vadd.f32 %v80, %v120
    %v126 = vadd.f32 %v81, %v121
    %v127 = vadd.f32 %v82, %v118
    %128 = vrot.lane.b32.xlu0 %v29, 127
    %v129 = vpop.permute.xlu0 %128
    %130 = vrot.lane.b32.xlu0 %v30, 127
    %v131 = vpop.permute.xlu0 %130
    %v132 = vsel %vm74, %v129, %v131
    %v136 = vmul.f32 %v24, %v129
    %v137 = vmul.f32 %v25, %v132
    %v138 = vmul.f32 %v26, %v131
    %s139 = scalar_lea.vmem %s1, 24
    %v140 = vld [vmem:[%s139] sm:$0xff]
    %142 = vset.pattern.permute.xlu0 0
    %143 = vperm.xlu0 %142, %v140
    %v144 = vpop.permute.xlu0 %143
    %v146 = vmul.f32 %v136, %v144
    %v147 = vmul.f32 %v137, %v144
    %v148 = vmul.f32 %v138, %v144
    %152 = vrot.lane.b32.xlu0 %v146, 112
    %v153 = vpop.permute.xlu0 %152
    %154 = vrot.lane.b32.xlu0 %v147, 112
    %v155 = vpop.permute.xlu0 %154
    %156 = vrot.lane.b32.xlu0 %v148, 112
    %v157 = vpop.permute.xlu0 %156
    %vm158 = vcmask 916480
    %v159 = vsel %vm158, %v153, %v155
    %v160 = vsel %vm158, %v155, %v157
    %v164 = vadd.f32 %v125, %v159
    %v165 = vadd.f32 %v126, %v160
    %v166 = vadd.f32 %v127, %v157
    %s167 = scalar_lea.vmem %s1, 32
    %v168 = vld [vmem:[%s167] sm:$0xff]
    %170 = vset.pattern.permute.xlu0 0
    %171 = vperm.xlu0 %170, %v168
    %v172 = vpop.permute.xlu0 %171
    %v174 = vmul.f32 %v25, %v172
    %v175 = vmul.f32 %v26, %v172
    %178 = vrot.lane.b32.xlu0 %v174, 111
    %v179 = vpop.permute.xlu0 %178
    %180 = vrot.lane.b32.xlu0 %v175, 111
    %v181 = vpop.permute.xlu0 %180
    %v182 = vsel %vm35, %v179, %v181
    %v186 = vadd.f32 %v164, %v179
    %v187 = vadd.f32 %v165, %v182
    %v188 = vadd.f32 %v166, %v181
    %v189 = vld [vmem:[#allocation2 + $0x8] sm:$0xff]
    %v190 = vld [vmem:[#allocation2 + $0x10] sm:$0xff]
    %v191 = vld [vmem:[#allocation2 + $0x18] sm:$0xff]
    %192 = vrot.lane.b32.xlu0 %v86, 1
    %v193 = vpop.permute.xlu0 %192
    %194 = vrot.lane.b32.xlu0 %v87, 1
    %v195 = vpop.permute.xlu0 %194
    %vm196 = vcmask 7168
    %v197 = vsel %vm196, %v193, %v195
    %v201 = vmul.f32 %v189, %v193
    %v202 = vmul.f32 %v190, %v197
    %v203 = vmul.f32 %v191, %v195
    %s204 = scalar_lea.vmem %s1, 40
    %v205 = vld [vmem:[%s204] sm:$0xff]
    %207 = vset.pattern.permute.xlu0 0
    %208 = vperm.xlu0 %207, %v205
    %v209 = vpop.permute.xlu0 %208
    %v211 = vmul.f32 %v201, %v209
    %v212 = vmul.f32 %v202, %v209
    %v213 = vmul.f32 %v203, %v209
    %217 = vrot.lane.b32.xlu0 %v211, 110
    %v218 = vpop.permute.xlu0 %217
    %219 = vrot.lane.b32.xlu0 %v212, 110
    %v220 = vpop.permute.xlu0 %219
    %221 = vrot.lane.b32.xlu0 %v213, 110
    %v222 = vpop.permute.xlu0 %221
    %vm223 = vcmask 900096
    %v224 = vsel %vm223, %v218, %v220
    %v225 = vsel %vm223, %v220, %v222
    %v229 = vadd.f32 %v186, %v218
    %v230 = vadd.f32 %v187, %v224
    %v231 = vadd.f32 %v188, %v225
    %232 = vrot.lane.b32.xlu0 %v29, 15
    %v233 = vpop.permute.xlu0 %232
    %234 = vrot.lane.b32.xlu0 %v30, 15
    %v235 = vpop.permute.xlu0 %234
    %vm236 = vcmask 121856
    %v237 = vsel %vm236, %v233, %v235
    %v241 = vmul.f32 %v189, %v233
    %v242 = vmul.f32 %v190, %v237
    %v243 = vmul.f32 %v191, %v235
    %s244 = scalar_lea.vmem %s1, 48
    %v245 = vld [vmem:[%s244] sm:$0xff]
    %247 = vset.pattern.permute.xlu0 0
    %248 = vperm.xlu0 %247, %v245
    %v249 = vpop.permute.xlu0 %248
    %v251 = vmul.f32 %v241, %v249
    %v252 = vmul.f32 %v242, %v249
    %v253 = vmul.f32 %v243, %v249
    %257 = vrot.lane.b32.xlu0 %v251, 96
    %v258 = vpop.permute.xlu0 %257
    %259 = vrot.lane.b32.xlu0 %v252, 96
    %v260 = vpop.permute.xlu0 %259
    %261 = vrot.lane.b32.xlu0 %v253, 96
    %v262 = vpop.permute.xlu0 %261
    %vm263 = vcmask 785408
    %v264 = vsel %vm263, %v258, %v260
    %v265 = vsel %vm263, %v260, %v262
    %v269 = vadd.f32 %v229, %v258
    %v270 = vadd.f32 %v230, %v264
    %v271 = vadd.f32 %v231, %v265
    %s272 = scalar_lea.vmem %s1, 56
    %v273 = vld [vmem:[%s272] sm:$0xff]
    %275 = vset.pattern.permute.xlu0 0
    %276 = vperm.xlu0 %275, %v273
    %v277 = vpop.permute.xlu0 %276
    %v279 = vmul.f32 %v189, %v277
    %v280 = vmul.f32 %v190, %v277
    %v281 = vmul.f32 %v191, %v277
    %285 = vrot.lane.b32.xlu0 %v279, 95
    %v286 = vpop.permute.xlu0 %285
    %287 = vrot.lane.b32.xlu0 %v280, 95
    %v288 = vpop.permute.xlu0 %287
    %289 = vrot.lane.b32.xlu0 %v281, 95
    %v290 = vpop.permute.xlu0 %289
    %vm291 = vcmask 777216
    %v292 = vsel %vm291, %v286, %v288
    %v293 = vsel %vm291, %v288, %v290
    %v297 = vadd.f32 %v269, %v286
    %v298 = vadd.f32 %v270, %v292
    %v299 = vadd.f32 %v271, %v293
    %300 = vrot.lane.b32.xlu0 %v86, 17
    %v301 = vpop.permute.xlu0 %300
    %302 = vrot.lane.b32.xlu0 %v87, 17
    %v303 = vpop.permute.xlu0 %302
    %vm304 = vcmask 138240
    %v305 = vsel %vm304, %v301, %v303
    %v309 = vmul.f32 %v189, %v301
    %v310 = vmul.f32 %v190, %v305
    %v311 = vmul.f32 %v191, %v303
    %s312 = scalar_lea.vmem %s1, 64
    %v313 = vld [vmem:[%s312] sm:$0xff]
    %315 = vset.pattern.permute.xlu0 0
    %316 = vperm.xlu0 %315, %v313
    %v317 = vpop.permute.xlu0 %316
    %v319 = vmul.f32 %v309, %v317
    %v320 = vmul.f32 %v310, %v317
    %v321 = vmul.f32 %v311, %v317
    %325 = vrot.lane.b32.xlu0 %v319, 94
    %v326 = vpop.permute.xlu0 %325
    %327 = vrot.lane.b32.xlu0 %v320, 94
    %v328 = vpop.permute.xlu0 %327
    %329 = vrot.lane.b32.xlu0 %v321, 94
    %v330 = vpop.permute.xlu0 %329
    %vm331 = vcmask 769024
    %v332 = vsel %vm331, %v326, %v328
    %v333 = vsel %vm331, %v328, %v330
    %v337 = vadd.f32 %v297, %v326
    %v338 = vadd.f32 %v298, %v332
    %v339 = vadd.f32 %v299, %v333
    %343 = vrot.lane.b32.xlu0 %v337, 17
    %v344 = vpop.permute.xlu0 %343
    %345 = vrot.lane.b32.xlu0 %v338, 17
    %v346 = vpop.permute.xlu0 %345
    %347 = vrot.lane.b32.xlu0 %v339, 17
    %v348 = vpop.permute.xlu0 %347
    %v349 = vsel %vm304, %v344, %v346
    %v350 = vsel %vm304, %v346, %v348
    %353 = vst [vmem:[#allocation3] sm:$0xff] %v349
    %354 = vst [vmem:[#allocation3 + $0x8] sm:$0xff] %v350
    %v355 = vld [vmem:[%s2] sm:$0xff]
    %v356 = vld [vmem:[%s2 + $0x8] sm:$0xff]
    %v357 = vld [vmem:[#allocation3] sm:$0xff]
    %v358 = vld [vmem:[#allocation3 + $0x8] sm:$0xff]
    %vm359 = vcmask 64512
    %v361 = vsel %vm359, %v355, 0
    %v364 = vsel %vm359, %v356, 0
    %366 = vmatpush.msra.mxu0 0.0
    %367 = vmatpush.msra.mxu0 0.0
    %368 = vmatpush.msra.mxu0 0.0
    %369 = vmatpush.msra.mxu0 0.0
    %370 = vmatpush.msra.mxu0 0.0
    %371 = vmatpush.msra.mxu0 0.0
    %372 = vmatpush.msra.mxu0 0.0
    %373 = vmatpush.msra.mxu0 0.0
    %374 = vmatpush.msra.mxu0 0.0
    %375 = vmatpush.msra.mxu0 0.0
    %376 = vmatpush.msra.mxu0 0.0
    %377 = vmatpush.msra.mxu0 0.0
    %378 = vmatpush.msra.mxu0 0.0
    %379 = vmatpush.msra.mxu0 0.0
    %380 = vmatpush.msra.mxu0 0.0
    %381 = vmatpush.msra.mxu0 %v357
    %382 = vmatmul.f32.gmra.mxu0 %v361
    %v383 = vpop.f32.mrf.mxu0
    %v384 = vadd.f32 0.0, %v383
    %385 = vmatmul.f32.gmra.mxu0 %v364
    %v386 = vpop.f32.mrf.mxu0
    %v387 = vadd.f32 0.0, %v386
    %388 = vdwg.mxu0
    %389 = vmatpush.msra.mxu0 0.0
    %390 = vmatpush.msra.mxu0 0.0
    %391 = vmatpush.msra.mxu0 0.0
    %392 = vmatpush.msra.mxu0 0.0
    %393 = vmatpush.msra.mxu0 0.0
    %394 = vmatpush.msra.mxu0 0.0
    %395 = vmatpush.msra.mxu0 0.0
    %396 = vmatpush.msra.mxu0 0.0
    %397 = vmatpush.msra.mxu0 0.0
    %398 = vmatpush.msra.mxu0 0.0
    %399 = vmatpush.msra.mxu0 0.0
    %400 = vmatpush.msra.mxu0 0.0
    %401 = vmatpush.msra.mxu0 0.0
    %402 = vmatpush.msra.mxu0 0.0
    %403 = vmatpush.msra.mxu0 0.0
    %404 = vmatpush.msra.mxu0 %v358
    %405 = vmatmul.f32.gmra.mxu0 %v361
    %v406 = vpop.f32.mrf.mxu0
    %v407 = vadd.f32 0.0, %v406
    %408 = vmatmul.f32.gmra.mxu0 %v364
    %v409 = vpop.f32.mrf.mxu0
    %v410 = vadd.f32 0.0, %v409
    %411 = vdwg.mxu0
    %412 = vst [vmem:[#allocation4] sm:$0xff] %v384
    %413 = vst [vmem:[#allocation4 + $0x8] sm:$0xff] %v407
    %414 = vst [vmem:[#allocation4 + $0x10] sm:$0xff] %v387
    %415 = vst [vmem:[#allocation4 + $0x18] sm:$0xff] %v410
    // Predicated region
    $region18: #{tpu_custom_call.1} parent=1 // pred_check
      _
    $region19: #{tpu_custom_call.1} parent=1 // pred_check_branch
      %417 = sbr.rel (0) target = $region21
    $region20: #{tpu_custom_call.1} parent=1 // pred_region
      %419 = vsyncadd [#allocation5], 0
      %s420 = sshll.u32 [#allocation4], 4
      %s421 = int_to_ptr.vmem [resolvable:$true] %s420
      %s422 = sshll.u32 %s4, 4
      %s423 = int_to_ptr.hbm [resolvable:$true] %s422
      %428 = dma.vmem_to_hbm [thread:$0]  %s421, 512, %s423, [#allocation5], 256, 256, 16
    $region21: #{tpu_custom_call.1} parent=1 // pred_fallthru
      _
    // Predicated region
    $region22: #{tpu_custom_call.1} parent=1 // pred_check
      _
    $region23: #{tpu_custom_call.1} parent=1 // pred_check_branch
      %430 = sbr.rel (0) target = $region25
    $region24: #{tpu_custom_call.1} parent=1 // pred_region
      %432 = dma.done [#allocation5], 512
    $region25: #{tpu_custom_call.1} parent=1 // pred_fallthru
      _
    %433 = vsyncpa [#allocation5], 1

</llo_original>
